<compile_context>
chip_gen: v5e
topology: v5e:2x2
jax: 0.10.0
libtpu: 0.0.40
codegen_flags: <defaults>
</compile_context>

<pallas_src>
import functools

import jax
import jax.numpy as jnp
from jax.experimental import pallas as pl
from jax.experimental.pallas import tpu as pltpu


def _round_up(x, m):
    return ((x + m - 1) // m) * m


def _head_kernel(x_ref, *refs, matmul_dtype):
    """Fused kernel: global average pool + sequential Linear/ReLU stack.

    x_ref: (TB, C, H*W) tile of the input.
    refs = (w0, b0, w1, b1, ..., wK, bK, out_ref)
      wi: (in_i, out_i) matmul_dtype   bi: (1, out_i) float32
    Last (wK, bK) pair is the classifier layer (no ReLU after it).
    """
    out_ref = refs[-1]
    params = refs[:-1]

    x = x_ref[...].astype(jnp.float32)                  # (TB, C, HW), lane-dense last axis
    inv_hw = 1.0 / x.shape[-1]
    # AdaptiveAvgPool2d((1,1)) + view(B, -1)  ==  mean over the flattened spatial axis -> (TB, C)
    pooled = jnp.sum(x, axis=-1) * inv_hw

    h = pooled
    n_layers = len(params) // 2
    for i in range(n_layers):
        w = params[2 * i][...]                          # (in_i, out_i), matmul_dtype
        b = params[2 * i + 1][...]                      # (1, out_i), f32
        h = jnp.dot(h.astype(matmul_dtype), w,
                    preferred_element_type=jnp.float32) + b
        if i < n_layers - 1:
            h = jnp.maximum(h, 0.0)                     # ReLU on all but the final classifier layer

    out_ref[...] = h.astype(out_ref.dtype)


@functools.partial(jax.jit, static_argnames=("num_classes", "matmul_dtype"))
def classification_head(x, weights, biases, *, num_classes, matmul_dtype=jnp.float32):
    """x: (B, C, H, W); weights[i]: (in_i, out_i); biases[i]: (out_i,)."""
    B, C, H, W = x.shape
    HW = H * W
    itemsize = jnp.dtype(x.dtype).itemsize

    # ---- batch tiling: TB multiple of 8, x tile ~<= 4 MiB (safe on v7x's 64 MiB VMEM w/ double buffer)
    bytes_per_row = C * HW * itemsize
    target_block_bytes = 4 * 1024 * 1024
    tb_cap = max(8, (target_block_bytes // max(bytes_per_row, 1)) // 8 * 8)
    TB = min(tb_cap, _round_up(B, 8))
    Bp = _round_up(B, TB)

    # ---- lane-dense spatial axis + batch padding (wrapper-side layout plumbing, not compute)
    x3 = x.reshape(B, C, HW)
    if Bp != B:
        x3 = jnp.pad(x3, ((0, Bp - B), (0, 0), (0, 0)))

    # ---- pad every layer's output width to a multiple of 128 -> lane-dense matmuls / unmasked stores.
    #      Zero-padded columns stay exactly zero through bias+ReLU, and the next layer's extra rows are
    #      zero, so the numerics are identical to the unpadded head.
    flat_params = []
    prev_width = C                                      # width of the activations entering layer i
    for w, b in zip(weights, biases):
        fan_in, fan_out = w.shape
        out_p = _round_up(fan_out, 128)
        w_p = jnp.zeros((prev_width, out_p), jnp.float32)
        w_p = w_p.at[:fan_in, :fan_out].set(w.astype(jnp.float32))
        b_p = jnp.zeros((1, out_p), jnp.float32)
        b_p = b_p.at[:, :fan_out].set(b.astype(jnp.float32).reshape(1, -1))
        flat_params.append(w_p.astype(matmul_dtype))    # matmul operand dtype (f32 or bf16)
        flat_params.append(b_p)                         # bias / accumulation stays f32
        prev_width = out_p
    NCp = prev_width                                    # padded classifier width (multiple of 128)

    # ---- VMEM budget derived from the actual tiles (double buffers) + resident parameters
    x_block_bytes = TB * C * HW * itemsize
    out_block_bytes = TB * NCp * itemsize
    param_bytes = sum(int(p.size) * jnp.dtype(p.dtype).itemsize for p in flat_params)
    vmem_limit = 2 * x_block_bytes + 2 * out_block_bytes + param_bytes + (8 << 20)
    vmem_limit = int(min(max(vmem_limit, 16 << 20), 64 << 20))

    grid = (Bp // TB,)
    in_specs = [pl.BlockSpec((TB, C, HW), lambda i: (i, 0, 0))]
    for p in flat_params:
        in_specs.append(pl.BlockSpec(p.shape, lambda i: (0, 0)))   # whole array, DMA'd once
    out_specs = pl.BlockSpec((TB, NCp), lambda i: (i, 0))

    out_full = pl.pallas_call(
        functools.partial(_head_kernel, matmul_dtype=matmul_dtype),
        out_shape=jax.ShapeDtypeStruct((Bp, NCp), x.dtype),
        grid_spec=pltpu.PrefetchScalarGridSpec(
            num_scalar_prefetch=0,
            grid=grid,
            in_specs=in_specs,
            out_specs=out_specs,
        ),
        compiler_params=pltpu.CompilerParams(
            dimension_semantics=("parallel",),          # batch tiles shard across TCs on v7x
            vmem_limit_bytes=vmem_limit,
        ),
    )(x3, *flat_params)

    return out_full[:B, :num_classes]


def _reference(x, weights, biases):
    """Plain-JAX reference for correctness checking."""
    h = jnp.mean(x.astype(jnp.float32), axis=(2, 3))
    for i, (w, b) in enumerate(zip(weights, biases)):
        h = h @ w + b
        if i < len(weights) - 1:
            h = jnp.maximum(h, 0.0)
    return h


if __name__ == "__main__":
    # Small, deterministic example consistent with the module:
    #   input channels = out_channels[0], so out_channels = [C, hidden], e.g. [4, 32]
    B, C, H, W = 2, 4, 16, 16
    out_channels = [C, 32]
    num_classes = 10

    key = jax.random.PRNGKey(0)
    kx, *kps = jax.random.split(key, 1 + 2 * len(out_channels))

    x = jax.random.normal(kx, (B, C, H, W), dtype=jnp.float32)

    # Layer dims: Linear(out_channels[i] -> out_channels[i+1]) ... Linear(out_channels[-1] -> num_classes)
    dims = list(out_channels) + [num_classes]
    weights, biases = [], []
    for i in range(len(dims) - 1):
        fan_in, fan_out = dims[i], dims[i + 1]
        kw, kb = kps[2 * i], kps[2 * i + 1]
        scale = 1.0 / jnp.sqrt(jnp.float32(fan_in))
        weights.append(jax.random.uniform(kw, (fan_in, fan_out), jnp.float32, -scale, scale))
        biases.append(jax.random.uniform(kb, (fan_out,), jnp.float32, -scale, scale))

    ref = _reference(x, weights, biases)

    # f32 matmul path: exact parity with the PyTorch/JAX f32 reference.
    out = classification_head(x, tuple(weights), tuple(biases), num_classes=num_classes)
    out = jax.block_until_ready(out)
    assert out.shape == (B, num_classes), out.shape
    assert jnp.allclose(out, ref, atol=1e-4, rtol=1e-4), float(jnp.max(jnp.abs(out - ref)))

    # bf16 matmul operands (f32 accumulation): perf option for large heads, looser tolerance.
    out_bf16 = classification_head(x, tuple(weights), tuple(biases),
                                   num_classes=num_classes, matmul_dtype=jnp.bfloat16)
    out_bf16 = jax.block_until_ready(out_bf16)
    assert out_bf16.shape == (B, num_classes), out_bf16.shape
    assert jnp.allclose(out_bf16, ref, atol=5e-2, rtol=5e-2), float(jnp.max(jnp.abs(out_bf16 - ref)))

    print("KERNEL_OK")
</pallas_src>

<mosaic_0001>
module attributes {stable_mosaic.version = 11 : i64} {
  func.func @_head_kernel(%arg0: i32, %arg1: memref<8x4x256xf32, #tpu.memory_space<vmem>>, %arg2: memref<4x128xf32, #tpu.memory_space<vmem>>, %arg3: memref<1x128xf32, #tpu.memory_space<vmem>>, %arg4: memref<128x128xf32, #tpu.memory_space<vmem>>, %arg5: memref<1x128xf32, #tpu.memory_space<vmem>>, %arg6: memref<8x128xf32, #tpu.memory_space<vmem>>) attributes {dimension_semantics = [#tpu.dimension_semantics<parallel>], iteration_bounds = array<i64: 1>, scalar_prefetch = 0 : i64, scratch_operands = 0 : i64, tpu.core_type = #tpu.core_type<tc>, window_params = [{transform_indices = @transform_0, window_bounds = array<i64: 8, 4, 256>}, {pipeline_mode = #tpu.pipeline_mode<synchronous>, transform_indices = @transform_1, window_bounds = array<i64: 4, 128>}, {pipeline_mode = #tpu.pipeline_mode<synchronous>, transform_indices = @transform_2, window_bounds = array<i64: 1, 128>}, {pipeline_mode = #tpu.pipeline_mode<synchronous>, transform_indices = @transform_3, window_bounds = array<i64: 128, 128>}, {pipeline_mode = #tpu.pipeline_mode<synchronous>, transform_indices = @transform_4, window_bounds = array<i64: 1, 128>}, {transform_indices = @transform_5, window_bounds = array<i64: 8, 128>}]} {
    %c0 = arith.constant 0 : index
    %c0_0 = arith.constant 0 : index
    %c0_1 = arith.constant 0 : index
    %0 = vector.load %arg1[%c0, %c0_0, %c0_1] : memref<8x4x256xf32, #tpu.memory_space<vmem>>, vector<8x4x256xf32>
    %cst = arith.constant dense<0.000000e+00> : vector<8x4xf32>
    %1 = vector.multi_reduction <add>, %0, %cst [2] : vector<8x4x256xf32> to vector<8x4xf32>
    %cst_2 = arith.constant 3.906250e-03 : f32
    %2 = vector.broadcast %cst_2 : f32 to vector<8x4xf32>
    %3 = arith.mulf %1, %2 : vector<8x4xf32>
    %c0_3 = arith.constant 0 : index
    %c0_4 = arith.constant 0 : index
    %4 = vector.load %arg2[%c0_3, %c0_4] : memref<4x128xf32, #tpu.memory_space<vmem>>, vector<4x128xf32>
    %c0_5 = arith.constant 0 : index
    %c0_6 = arith.constant 0 : index
    %5 = vector.load %arg3[%c0_5, %c0_6] : memref<1x128xf32, #tpu.memory_space<vmem>>, vector<1x128xf32>
    %cst_7 = arith.constant dense<0.000000e+00> : vector<8x128xf32>
    %6 = tpu.matmul %3, %4, %cst_7 {dimension_numbers = #tpu.dot_dimension_numbers<[1], [0], [0], [1], [0, 0, 1, 1], [], []>} : vector<8x4xf32>, vector<4x128xf32>, vector<8x128xf32> -> vector<8x128xf32>
    %7 = vector.broadcast %5 : vector<1x128xf32> to vector<8x128xf32>
    %8 = arith.addf %6, %7 : vector<8x128xf32>
    %cst_8 = arith.constant 0.000000e+00 : f32
    %9 = vector.broadcast %cst_8 : f32 to vector<8x128xf32>
    %10 = arith.maximumf %8, %9 : vector<8x128xf32>
    %c0_9 = arith.constant 0 : index
    %c0_10 = arith.constant 0 : index
    %11 = vector.load %arg4[%c0_9, %c0_10] : memref<128x128xf32, #tpu.memory_space<vmem>>, vector<128x128xf32>
    %c0_11 = arith.constant 0 : index
    %c0_12 = arith.constant 0 : index
    %12 = vector.load %arg5[%c0_11, %c0_12] : memref<1x128xf32, #tpu.memory_space<vmem>>, vector<1x128xf32>
    %cst_13 = arith.constant dense<0.000000e+00> : vector<8x128xf32>
    %13 = tpu.matmul %10, %11, %cst_13 {dimension_numbers = #tpu.dot_dimension_numbers<[1], [0], [0], [1], [0, 0, 1, 1], [], []>} : vector<8x128xf32>, vector<128x128xf32>, vector<8x128xf32> -> vector<8x128xf32>
    %14 = vector.broadcast %12 : vector<1x128xf32> to vector<8x128xf32>
    %15 = arith.addf %13, %14 : vector<8x128xf32>
    %c0_14 = arith.constant 0 : index
    %c0_15 = arith.constant 0 : index
    %16 = vector.load %arg6[%c0_14, %c0_15] : memref<8x128xf32, #tpu.memory_space<vmem>>, vector<8x128xf32>
    tpu.vector_store %arg6[%c0_14, %c0_15], %15 {strides = array<i32>} : memref<8x128xf32, #tpu.memory_space<vmem>>, vector<8x128xf32>,
    return
  }
  func.func @transform_0(%arg0: i32) -> (i32, i32, i32) {
    %c0_i32 = arith.constant 0 : i32
    %c0_i32_0 = arith.constant 0 : i32
    %c0_i32_1 = arith.constant 0 : i32
    return %arg0, %c0_i32, %c0_i32_0 : i32, i32, i32
  }
  func.func @transform_1(%arg0: i32) -> (i32, i32) {
    %c0_i32 = arith.constant 0 : i32
    %c0_i32_0 = arith.constant 0 : i32
    %c0_i32_1 = arith.constant 0 : i32
    return %c0_i32, %c0_i32_0 : i32, i32
  }
  func.func @transform_2(%arg0: i32) -> (i32, i32) {
    %c0_i32 = arith.constant 0 : i32
    %c0_i32_0 = arith.constant 0 : i32
    %c0_i32_1 = arith.constant 0 : i32
    return %c0_i32, %c0_i32_0 : i32, i32
  }
  func.func @transform_3(%arg0: i32) -> (i32, i32) {
    %c0_i32 = arith.constant 0 : i32
    %c0_i32_0 = arith.constant 0 : i32
    %c0_i32_1 = arith.constant 0 : i32
    return %c0_i32, %c0_i32_0 : i32, i32
  }
  func.func @transform_4(%arg0: i32) -> (i32, i32) {
    %c0_i32 = arith.constant 0 : i32
    %c0_i32_0 = arith.constant 0 : i32
    %c0_i32_1 = arith.constant 0 : i32
    return %c0_i32, %c0_i32_0 : i32, i32
  }
  func.func @transform_5(%arg0: i32) -> (i32, i32) {
    %c0_i32 = arith.constant 0 : i32
    %c0_i32_0 = arith.constant 0 : i32
    return %arg0, %c0_i32 : i32, i32
  }
}

</mosaic_0001>

<llo_original>
// kernel: classification_head.1
$region0: #{classification_head.1}
  #allocation0 [shape = 'u32[]', space=smem, size = 0x4, offset = 0x4, fixed_abs, tag = 'smem constant byte address 0x4 - core index']
  #allocation1 [shape = 'u32[72,128]{1,0:T(1,128)}', space=vmem, size = 0x9000, scoped, tag = 'internal scratch']
  %s0 = inlined_call_operand.vmem [shape: f32[8,4,256], index: 0, kind: input, shape index: {}]
  %s1 = inlined_call_operand.vmem [shape: f32[4,128], index: 1, kind: input, shape index: {}]
  %s2 = inlined_call_operand.vmem [shape: f32[1,128], index: 2, kind: input, shape index: {}]
  %s3 = inlined_call_operand.vmem [shape: f32[128,128], index: 3, kind: input, shape index: {}]
  %s4 = inlined_call_operand.vmem [shape: f32[1,128], index: 4, kind: input, shape index: {}]
  %s5 = inlined_call_operand.vmem [shape: f32[8,128], index: 5, kind: output, shape index: {}]
  %s6 = sld [smem:[#allocation0]]
  $region30: #{classification_head.1} parent=0
    _
  %s8 = ssub.s32 1, %s6
  %s9 = scalar_select 0, %s8, %s6
  // Predicated region
  $region2: #{classification_head.1} parent=0 // pred_check
    _
  $region3: #{classification_head.1} parent=0 // pred_check_branch
    %11 = sbr.rel (0) target = $region5
  $region4: #{classification_head.1} parent=0 // pred_region
    _
  $region5: #{classification_head.1} parent=0 // pred_fallthru
    _
  // Predicated region
  $region6: #{classification_head.1} parent=0 // pred_check
    _
  $region7: #{classification_head.1} parent=0 // pred_check_branch
    %13 = sbr.rel (0) target = $region9
  $region8: #{classification_head.1} parent=0 // pred_region
    _
  $region9: #{classification_head.1} parent=0 // pred_fallthru
    _
  // Predicated region
  $region10: #{classification_head.1} parent=0 // pred_check
    _
  $region11: #{classification_head.1} parent=0 // pred_check_branch
    %15 = sbr.rel (0) target = $region13
  $region12: #{classification_head.1} parent=0 // pred_region
    _
  $region13: #{classification_head.1} parent=0 // pred_fallthru
    _
  // Predicated region
  $region14: #{classification_head.1} parent=0 // pred_check
    _
  $region15: #{classification_head.1} parent=0 // pred_check_branch
    %17 = sbr.rel (0) target = $region17
  $region16: #{classification_head.1} parent=0 // pred_region
    _
  $region17: #{classification_head.1} parent=0 // pred_fallthru
    _
  // Predicated region
  $region18: #{classification_head.1} parent=0 // pred_check
    _
  $region19: #{classification_head.1} parent=0 // pred_check_branch
    %19 = sbr.rel (0) target = $region21
  $region20: #{classification_head.1} parent=0 // pred_region
    _
  $region21: #{classification_head.1} parent=0 // pred_fallthru
    _
  %v20 = vld [vmem:[%s0] sm:$0xff]
  %v21 = vld [vmem:[%s0 + $0x8] sm:$0xff]
  %v22 = vld [vmem:[%s0 + $0x10] sm:$0xff]
  %v23 = vld [vmem:[%s0 + $0x18] sm:$0xff]
  %v24 = vld [vmem:[%s0 + $0x20] sm:$0xff]
  %v25 = vld [vmem:[%s0 + $0x28] sm:$0xff]
  %v26 = vld [vmem:[%s0 + $0x30] sm:$0xff]
  %v27 = vld [vmem:[%s0 + $0x38] sm:$0xff]
  %36 = vst [vmem:[#allocation1] ss:$2 sm:$0xff] %v20
  %v37 = vld.sshfl [vmem:[#allocation1] sm:$0xff pattern:$0x75316420]
  %v38 = vld.sshfl [vmem:[#allocation1 + $0x8] sm:$0xff pattern:$0x75316420]
  %s39 = scalar_lea.vmem [#allocation1], 16
  %40 = vst [vmem:[%s39] ss:$2 sm:$0xff] %v21
  %v41 = vld.sshfl [vmem:[#allocation1 + $0x10] sm:$0xff pattern:$0x75316420]
  %v42 = vld.sshfl [vmem:[#allocation1 + $0x18] sm:$0xff pattern:$0x75316420]
  %s43 = scalar_lea.vmem [#allocation1], 32
  %44 = vst [vmem:[%s43] ss:$2 sm:$0xff] %v22
  %v45 = vld.sshfl [vmem:[#allocation1 + $0x20] sm:$0xff pattern:$0x75316420]
  %v46 = vld.sshfl [vmem:[#allocation1 + $0x28] sm:$0xff pattern:$0x75316420]
  %s47 = scalar_lea.vmem [#allocation1], 48
  %48 = vst [vmem:[%s47] ss:$2 sm:$0xff] %v23
  %v49 = vld.sshfl [vmem:[#allocation1 + $0x30] sm:$0xff pattern:$0x75316420]
  %v50 = vld.sshfl [vmem:[#allocation1 + $0x38] sm:$0xff pattern:$0x75316420]
  %51 = vst [vmem:[#allocation1] ss:$2 sm:$0xff] %v24
  %v52 = vld.sshfl [vmem:[#allocation1] sm:$0xff pattern:$0x75316420]
  %v53 = vld.sshfl [vmem:[#allocation1 + $0x8] sm:$0xff pattern:$0x75316420]
  %54 = vst [vmem:[%s39] ss:$2 sm:$0xff] %v25
  %v55 = vld.sshfl [vmem:[#allocation1 + $0x10] sm:$0xff pattern:$0x75316420]
  %v56 = vld.sshfl [vmem:[#allocation1 + $0x18] sm:$0xff pattern:$0x75316420]
  %57 = vst [vmem:[%s43] ss:$2 sm:$0xff] %v26
  %v58 = vld.sshfl [vmem:[#allocation1 + $0x20] sm:$0xff pattern:$0x75316420]
  %v59 = vld.sshfl [vmem:[#allocation1 + $0x28] sm:$0xff pattern:$0x75316420]
  %60 = vst [vmem:[%s47] ss:$2 sm:$0xff] %v27
  %v61 = vld.sshfl [vmem:[#allocation1 + $0x30] sm:$0xff pattern:$0x75316420]
  %v62 = vld.sshfl [vmem:[#allocation1 + $0x38] sm:$0xff pattern:$0x75316420]
  %vm79 = vcmask 1043456
  %v80 = vsel %vm79, %v37, 0.0
  %v81 = vsel %vm79, %v38, 0.0
  %v82 = vadd.f32 %v80, %v81
  %83 = vadd.xlane.f32.xlu0 %v82
  %v84 = vpop.xlane.xlu0 %83
  %v85 = vsel %vm79, %v41, 0.0
  %v86 = vsel %vm79, %v42, 0.0
  %v87 = vadd.f32 %v85, %v86
  %88 = vadd.xlane.f32.xlu0 %v87
  %v89 = vpop.xlane.xlu0 %88
  %v90 = vsel %vm79, %v45, 0.0
  %v91 = vsel %vm79, %v46, 0.0
  %v92 = vadd.f32 %v90, %v91
  %93 = vadd.xlane.f32.xlu0 %v92
  %v94 = vpop.xlane.xlu0 %93
  %v95 = vsel %vm79, %v49, 0.0
  %v96 = vsel %vm79, %v50, 0.0
  %v97 = vadd.f32 %v95, %v96
  %98 = vadd.xlane.f32.xlu0 %v97
  %v99 = vpop.xlane.xlu0 %98
  %v100 = vsel %vm79, %v52, 0.0
  %v101 = vsel %vm79, %v53, 0.0
  %v102 = vadd.f32 %v100, %v101
  %103 = vadd.xlane.f32.xlu0 %v102
  %v104 = vpop.xlane.xlu0 %103
  %v105 = vsel %vm79, %v55, 0.0
  %v106 = vsel %vm79, %v56, 0.0
  %v107 = vadd.f32 %v105, %v106
  %108 = vadd.xlane.f32.xlu0 %v107
  %v109 = vpop.xlane.xlu0 %108
  %v110 = vsel %vm79, %v58, 0.0
  %v111 = vsel %vm79, %v59, 0.0
  %v112 = vadd.f32 %v110, %v111
  %113 = vadd.xlane.f32.xlu0 %v112
  %v114 = vpop.xlane.xlu0 %113
  %v115 = vsel %vm79, %v61, 0.0
  %v116 = vsel %vm79, %v62, 0.0
  %v117 = vadd.f32 %v115, %v116
  %118 = vadd.xlane.f32.xlu0 %v117
  %v119 = vpop.xlane.xlu0 %118
  %v120 = vmul.f32 %v84, 0.00390625
  %v121 = vmul.f32 %v89, 0.00390625
  %v122 = vmul.f32 %v94, 0.00390625
  %v123 = vmul.f32 %v99, 0.00390625
  %v124 = vmul.f32 %v104, 0.00390625
  %v125 = vmul.f32 %v109, 0.00390625
  %v126 = vmul.f32 %v114, 0.00390625
  %v127 = vmul.f32 %v119, 0.00390625
  %v128 = vld [vmem:[%s1] sm:$0xf]
  %v129 = vld [vmem:[%s2] sm:$0x1]
  %v131 = vperm.slane %v129, 0
  %v141 = vlaneseq
  %v142 = vand.u32 %v141, 127
  %v143 = vperm.slane %v120, %v142
  %v144 = vperm.slane %v121, %v142
  %v145 = vperm.slane %v122, %v142
  %v146 = vperm.slane %v123, %v142
  %v147 = vperm.slane %v124, %v142
  %v148 = vperm.slane %v125, %v142
  %v149 = vperm.slane %v126, %v142
  %v150 = vperm.slane %v127, %v142
  %vm151 = vcmask 1041409
  %v152 = vsel %vm151, %v144, %v143
  %vm153 = vcmask 1042434
  %v154 = vsel %vm153, %v145, %v152
  %vm155 = vcmask 1043459
  %v156 = vsel %vm155, %v146, %v154
  %vm157 = vcmask 1044484
  %v158 = vsel %vm157, %v147, %v156
  %vm159 = vcmask 1045509
  %v160 = vsel %vm159, %v148, %v158
  %vm161 = vcmask 1046534
  %v162 = vsel %vm161, %v149, %v160
  %vm163 = vcmask 1047559
  %v164 = vsel %vm163, %v150, %v162
  %vm165 = vcmask 31744
  %v166 = vsel %vm165, %v164, 0
  %v169 = vsel %vm79, %v128, 0
  %171 = vmatpush.msra.mxu0 0.0
  %172 = vmatpush.msra.mxu0 0.0
  %173 = vmatpush.msra.mxu0 0.0
  %174 = vmatpush.msra.mxu0 0.0
  %175 = vmatpush.msra.mxu0 0.0
  %176 = vmatpush.msra.mxu0 0.0
  %177 = vmatpush.msra.mxu0 0.0
  %178 = vmatpush.msra.mxu0 0.0
  %179 = vmatpush.msra.mxu0 0.0
  %180 = vmatpush.msra.mxu0 0.0
  %181 = vmatpush.msra.mxu0 0.0
  %182 = vmatpush.msra.mxu0 0.0
  %183 = vmatpush.msra.mxu0 0.0
  %184 = vmatpush.msra.mxu0 0.0
  %185 = vmatpush.msra.mxu0 0.0
  %186 = vmatpush.msra.mxu0 %v169
  %187 = vmatmul.f32.gmra.mxu0 %v166
  %v188 = vpop.f32.mrf.mxu0
  %v189 = vadd.f32 %v131, %v188
  %190 = vdwg.mxu0
  %v191 = vmax.f32 %v189, 0.0
  %v192 = vld [vmem:[%s3] sm:$0xff]
  %v193 = vld [vmem:[%s3 + $0x8] sm:$0xff]
  %v194 = vld [vmem:[%s3 + $0x10] sm:$0xff]
  %v195 = vld [vmem:[%s3 + $0x18] sm:$0xff]
  %v196 = vld [vmem:[%s3 + $0x20] sm:$0xff]
  %v197 = vld [vmem:[%s3 + $0x28] sm:$0xff]
  %v198 = vld [vmem:[%s3 + $0x30] sm:$0xff]
  %v199 = vld [vmem:[%s3 + $0x38] sm:$0xff]
  %v200 = vld [vmem:[%s3 + $0x40] sm:$0xff]
  %v201 = vld [vmem:[%s3 + $0x48] sm:$0xff]
  %v202 = vld [vmem:[%s3 + $0x50] sm:$0xff]
  %v203 = vld [vmem:[%s3 + $0x58] sm:$0xff]
  %v204 = vld [vmem:[%s3 + $0x60] sm:$0xff]
  %v205 = vld [vmem:[%s3 + $0x68] sm:$0xff]
  %v206 = vld [vmem:[%s3 + $0x70] sm:$0xff]
  %v207 = vld [vmem:[%s3 + $0x78] sm:$0xff]
  %v208 = vld [vmem:[%s4] sm:$0x1]
  %v210 = vperm.slane %v208, 0
  %212 = vmatpush.msra.mxu0 %v207
  %213 = vmatpush.msra.mxu0 %v206
  %214 = vmatpush.msra.mxu0 %v205
  %215 = vmatpush.msra.mxu0 %v204
  %216 = vmatpush.msra.mxu0 %v203
  %217 = vmatpush.msra.mxu0 %v202
  %218 = vmatpush.msra.mxu0 %v201
  %219 = vmatpush.msra.mxu0 %v200
  %220 = vmatpush.msra.mxu0 %v199
  %221 = vmatpush.msra.mxu0 %v198
  %222 = vmatpush.msra.mxu0 %v197
  %223 = vmatpush.msra.mxu0 %v196
  %224 = vmatpush.msra.mxu0 %v195
  %225 = vmatpush.msra.mxu0 %v194
  %226 = vmatpush.msra.mxu0 %v193
  %227 = vmatpush.msra.mxu0 %v192
  %228 = vmatmul.f32.gmra.mxu0 %v191
  %v229 = vpop.f32.mrf.mxu0
  %v230 = vadd.f32 %v210, %v229
  %231 = vdwg.mxu0
  %232 = vst [vmem:[%s5] sm:$0xff] %v230
  // Predicated region
  $region22: #{classification_head.1} parent=0 // pred_check
    _
  $region23: #{classification_head.1} parent=0 // pred_check_branch
    %234 = sbr.rel (0) target = $region25
  $region24: #{classification_head.1} parent=0 // pred_region
    _
  $region25: #{classification_head.1} parent=0 // pred_fallthru
    _
  // Predicated region
  $region26: #{classification_head.1} parent=0 // pred_check
    _
  $region27: #{classification_head.1} parent=0 // pred_check_branch
    %236 = sbr.rel (0) target = $region29
  $region28: #{classification_head.1} parent=0 // pred_region
    _
  $region29: #{classification_head.1} parent=0 // pred_fallthru
    _

</llo_original>
